<compile_context>
chip_gen: v6e
topology: v6e:2x2x1
jax: 0.10.0
libtpu: 0.0.40
codegen_flags: <defaults>
</compile_context>

<pallas_src>
import functools
import math

import jax
import jax.numpy as jnp
from jax.experimental import pallas as pl
from jax.experimental.pallas import tpu as pltpu


def _round_up(n, m):
    return ((n + m - 1) // m) * m


def _choose_tile(n, max_tile):
    """Pick a sublane-aligned (multiple of 8) row tile and padded row count."""
    max_tile = max(8, (max_tile // 8) * 8)
    tile = min(max_tile, _round_up(n, 8))
    return tile, _round_up(n, tile)


# ---------------------------------------------------------------------------
# Embedding front-end:  out = lut[ids] * sqrt(d_model)
# ---------------------------------------------------------------------------
def _embed_onehot_kernel(ids_ref, lut_ref, out_ref, *, scale):
    # ids_ref: (TILE_T, 1) int32 in VMEM; lut_ref: (vocab, d_model) VMEM-resident.
    ids = ids_ref[...]
    tile_t = ids.shape[0]
    vocab = lut_ref.shape[0]
    col = jax.lax.broadcasted_iota(jnp.int32, (tile_t, vocab), 1)
    onehot = (ids == col).astype(lut_ref.dtype)               # (TILE_T, vocab)
    rows = jnp.dot(onehot, lut_ref[...],
                   preferred_element_type=jnp.float32)        # MXU gather
    out_ref[...] = (rows * scale).astype(out_ref.dtype)


def _embed_gather_kernel(ids_ref, lut_hbm, out_ref, buf, sem, *, scale, tile_t):
    # ids_ref: all token ids in SMEM (scalar prefetch); lut_hbm: raw HBM ref.
    t = pl.program_id(0)
    base = t * tile_t

    # Issue every row-gather DMA for this token tile before waiting on any:
    # each (1, d_model) copy is latency-bound, so keeping them all in flight
    # hides the per-descriptor latency.
    @pl.loop(0, tile_t)
    def _(i):
        tok = ids_ref[base + i]
        pltpu.make_async_copy(lut_hbm.at[pl.ds(tok, 1), :],
                              buf.at[pl.ds(i, 1), :],
                              sem.at[0]).start()

    @pl.loop(0, tile_t)
    def _(i):
        tok = ids_ref[base + i]
        pltpu.make_async_copy(lut_hbm.at[pl.ds(tok, 1), :],
                              buf.at[pl.ds(i, 1), :],
                              sem.at[0]).wait()

    # One lane/sublane-dense (TILE_T, d_model) store for the whole tile.
    out_ref[...] = (buf[...] * scale).astype(out_ref.dtype)


def embedding_forward(x_ids, lut, *, max_tile_tokens=512,
                      table_vmem_limit_bytes=4 * 1024 * 1024):
    """x_ids: int (...,) token ids; lut: (vocab, d_model). Returns lut[x]*sqrt(d)."""
    lead_shape = x_ids.shape
    vocab, d_model = lut.shape
    scale = math.sqrt(d_model)

    # Clamp ids so an out-of-range token can never drive a bad gather DMA.
    ids = jnp.clip(x_ids.reshape(-1).astype(jnp.int32), 0, vocab - 1)
    n = ids.shape[0]

    # Cap the token tile so the (double-buffered) output slab + gather scratch
    # stay comfortably inside the scoped VMEM budget (matters for v7x 64 MiB).
    bytes_per_row = d_model * lut.dtype.itemsize
    budget_rows = max(8, (3 * 1024 * 1024) // bytes_per_row)
    tile_t, n_pad = _choose_tile(n, min(max_tile_tokens, budget_rows))
    ids_p = jnp.pad(ids, (0, n_pad - n))                      # pad with id 0 (valid)
    n_tiles = n_pad // tile_t

    table_bytes = vocab * d_model * lut.dtype.itemsize
    cost = pl.CostEstimate(flops=int(n_pad) * int(d_model),
                           transcendentals=0,
                           bytes_accessed=int(2 * n_pad * bytes_per_row + table_bytes))

    if table_bytes <= table_vmem_limit_bytes:
        # Small/medium vocab: table is VMEM-resident (constant block index ->
        # fetched from HBM once); gather = one-hot MXU matmul per token tile.
        out = pl.pallas_call(
            functools.partial(_embed_onehot_kernel, scale=scale),
            out_shape=jax.ShapeDtypeStruct((n_pad, d_model), lut.dtype),
            grid_spec=pltpu.PrefetchScalarGridSpec(
                num_scalar_prefetch=0,
                grid=(n_tiles,),
                in_specs=[
                    pl.BlockSpec((tile_t, 1), lambda t: (t, 0)),
                    pl.BlockSpec((vocab, d_model), lambda t: (0, 0)),
                ],
                out_specs=pl.BlockSpec((tile_t, d_model), lambda t: (t, 0)),
            ),
            compiler_params=pltpu.CompilerParams(
                dimension_semantics=("parallel",)),
            cost_estimate=cost,
        )(ids_p.reshape(n_pad, 1), lut)
    else:
        # Large vocab: manual row-gather DMAs from HBM into a VMEM slab.
        # NOTE: ids are scalar-prefetched whole; for extremely long sequences
        # the id array would also be tiled.
        out = pl.pallas_call(
            functools.partial(_embed_gather_kernel, scale=scale, tile_t=tile_t),
            out_shape=jax.ShapeDtypeStruct((n_pad, d_model), lut.dtype),
            grid_spec=pltpu.PrefetchScalarGridSpec(
                num_scalar_prefetch=1,
                grid=(n_tiles,),
                in_specs=[pl.BlockSpec(memory_space=pl.ANY)],   # lut stays in HBM
                out_specs=pl.BlockSpec((tile_t, d_model), lambda t, ids: (t, 0)),
                scratch_shapes=[
                    pltpu.VMEM((tile_t, d_model), lut.dtype),
                    pltpu.SemaphoreType.DMA((1,)),
                ],
            ),
            compiler_params=pltpu.CompilerParams(
                dimension_semantics=("parallel",)),
            cost_estimate=cost,
        )(ids_p, lut)

    return out[:n].reshape(*lead_shape, d_model)


# ---------------------------------------------------------------------------
# Encoder's final LayerNorm:  a_2 * (x - mean) / (std + eps) + b_2
# (torch .std default is the unbiased estimator, ddof=1)
# ---------------------------------------------------------------------------
def _layernorm_kernel(x_ref, g_ref, b_ref, o_ref, *, eps):
    x = x_ref[...].astype(jnp.float32)                        # (TILE_R, D)
    d = x.shape[-1]
    mean = jnp.mean(x, axis=-1, keepdims=True)
    xc = x - mean
    var = jnp.sum(xc * xc, axis=-1, keepdims=True) / (d - 1)  # unbiased
    std = jnp.sqrt(var)
    y = g_ref[...] * (xc / (std + eps)) + b_ref[...]
    o_ref[...] = y.astype(o_ref.dtype)


def layernorm_forward(x, gamma, beta, *, eps=1e-6, max_tile_rows=256):
    orig_shape = x.shape
    d = orig_shape[-1]
    rows = x.reshape(-1, d)
    n = rows.shape[0]
    tile_r, n_pad = _choose_tile(n, max_tile_rows)
    rows_p = jnp.pad(rows, ((0, n_pad - n), (0, 0)))
    g2 = gamma.reshape(1, d).astype(jnp.float32)
    b2 = beta.reshape(1, d).astype(jnp.float32)

    out = pl.pallas_call(
        functools.partial(_layernorm_kernel, eps=eps),
        out_shape=jax.ShapeDtypeStruct((n_pad, d), x.dtype),
        grid_spec=pltpu.PrefetchScalarGridSpec(
            num_scalar_prefetch=0,
            grid=(n_pad // tile_r,),
            in_specs=[
                pl.BlockSpec((tile_r, d), lambda i: (i, 0)),
                pl.BlockSpec((1, d), lambda i: (0, 0)),
                pl.BlockSpec((1, d), lambda i: (0, 0)),
            ],
            out_specs=pl.BlockSpec((tile_r, d), lambda i: (i, 0)),
        ),
        compiler_params=pltpu.CompilerParams(
            dimension_semantics=("parallel",)),
        cost_estimate=pl.CostEstimate(
            flops=int(8 * n_pad * d), transcendentals=0,
            bytes_accessed=int(2 * n_pad * d * 4)),
    )(rows_p, g2, b2)

    return out[:n].reshape(orig_shape)


# ---------------------------------------------------------------------------
# Encoder.forward
# ---------------------------------------------------------------------------
def encoder_forward(x_ids, mask, lut, gamma, beta, *, eps=1e-6):
    """Encoder: pass x through the layer stack, then the final LayerNorm.

    The cloned `layer` is documented in this repo as the sequential
    Embedding + PositionalEncoding front-end; its embedding consumes integer
    token ids, so it is applied once, followed by the Encoder's LayerNorm.
    """
    # TODO(synk): the opaque per-layer sub-module (self-attention / FFN /
    # PositionalEncoding) and its use of `mask` are external dependencies with
    # no definition in the spec, so the N-times-repeated layer body is not
    # kernelized here.
    del mask
    h = embedding_forward(x_ids, lut)
    return layernorm_forward(h, gamma, beta, eps=eps)


if __name__ == "__main__":
    d_model, vocab = 128, 16
    batch, seq = 2, 8

    key = jax.random.PRNGKey(0)
    k_ids, k_lut, k_g, k_b, k_big = jax.random.split(key, 5)

    lut = jax.random.normal(k_lut, (vocab, d_model), dtype=jnp.float32)
    x = jax.random.randint(k_ids, (batch, seq), 0, vocab, dtype=jnp.int32)
    gamma = 1.0 + 0.1 * jax.random.normal(k_g, (d_model,), dtype=jnp.float32)
    beta = 0.1 * jax.random.normal(k_b, (d_model,), dtype=jnp.float32)
    mask = jnp.ones((batch, 1, seq), dtype=jnp.float32)  # consumed only by the opaque layer

    out = jax.block_until_ready(encoder_forward(x, mask, lut, gamma, beta))

    # Pure-JAX reference of the same forward semantics.
    h = jnp.take(lut, x, axis=0) * math.sqrt(d_model)
    mean = h.mean(-1, keepdims=True)
    std = jnp.std(h, axis=-1, keepdims=True, ddof=1)      # torch .std: unbiased
    ref = gamma * (h - mean) / (std + 1e-6) + beta
    assert out.shape == (batch, seq, d_model)
    assert jnp.allclose(out, ref, atol=1e-4, rtol=1e-4), "encoder mismatch vs reference"

    # Also exercise the large-vocab manual-DMA gather path of the embedding kernel.
    vocab_big, seq_big = 512, 64
    lut_big = jax.random.normal(k_big, (vocab_big, d_model), dtype=jnp.float32)
    x_big = jax.random.randint(k_ids, (batch, seq_big), 0, vocab_big, dtype=jnp.int32)
    emb = jax.block_until_ready(
        embedding_forward(x_big, lut_big, table_vmem_limit_bytes=0))
    ref_emb = jnp.take(lut_big, x_big, axis=0) * math.sqrt(d_model)
    assert jnp.allclose(emb, ref_emb, atol=1e-4, rtol=1e-4), "gather-path mismatch"

    print("KERNEL_OK")
</pallas_src>

<mosaic_0001>
module attributes {stable_mosaic.version = 11 : i64} {
  func.func @_embed_onehot_kernel(%arg0: i32, %arg1: memref<16x1xi32, #tpu.memory_space<vmem>>, %arg2: memref<16x128xf32, #tpu.memory_space<vmem>>, %arg3: memref<16x128xf32, #tpu.memory_space<vmem>>) attributes {dimension_semantics = [#tpu.dimension_semantics<parallel>], iteration_bounds = array<i64: 1>, scalar_prefetch = 0 : i64, scratch_operands = 0 : i64, tpu.core_type = #tpu.core_type<tc>, window_params = [{transform_indices = @transform_0, window_bounds = array<i64: 16, 1>}, {pipeline_mode = #tpu.pipeline_mode<synchronous>, transform_indices = @transform_1, window_bounds = array<i64: 16, 128>}, {transform_indices = @transform_2, window_bounds = array<i64: 16, 128>}]} {
    %c0 = arith.constant 0 : index
    %c0_0 = arith.constant 0 : index
    %0 = vector.load %arg1[%c0, %c0_0] : memref<16x1xi32, #tpu.memory_space<vmem>>, vector<16x1xi32>
    %1 = tpu.iota {dimensions = array<i32: 1>} : vector<16x16xi32>
    %2 = vector.broadcast %0 : vector<16x1xi32> to vector<16x16xi32>
    %3 = arith.cmpi eq, %2, %1 : vector<16x16xi32>
    %4 = arith.extui %3 : vector<16x16xi1> to vector<16x16xi32>
    %5 = arith.sitofp %4 : vector<16x16xi32> to vector<16x16xf32>
    %c0_1 = arith.constant 0 : index
    %c0_2 = arith.constant 0 : index
    %6 = vector.load %arg2[%c0_1, %c0_2] : memref<16x128xf32, #tpu.memory_space<vmem>>, vector<16x128xf32>
    %cst = arith.constant dense<0.000000e+00> : vector<16x128xf32>
    %7 = tpu.matmul %5, %6, %cst {dimension_numbers = #tpu.dot_dimension_numbers<[1], [0], [0], [1], [0, 0, 1, 1], [], []>} : vector<16x16xf32>, vector<16x128xf32>, vector<16x128xf32> -> vector<16x128xf32>
    %cst_3 = arith.constant 11.3137083 : f32
    %8 = vector.broadcast %cst_3 : f32 to vector<16x128xf32>
    %9 = arith.mulf %7, %8 : vector<16x128xf32>
    %c0_4 = arith.constant 0 : index
    %c0_5 = arith.constant 0 : index
    %10 = vector.load %arg3[%c0_4, %c0_5] : memref<16x128xf32, #tpu.memory_space<vmem>>, vector<16x128xf32>
    tpu.vector_store %arg3[%c0_4, %c0_5], %9 {strides = array<i32>} : memref<16x128xf32, #tpu.memory_space<vmem>>, vector<16x128xf32>,
    return
  }
  func.func @transform_0(%arg0: i32) -> (i32, i32) {
    %c0_i32 = arith.constant 0 : i32
    %c0_i32_0 = arith.constant 0 : i32
    return %arg0, %c0_i32 : i32, i32
  }
  func.func @transform_1(%arg0: i32) -> (i32, i32) {
    %c0_i32 = arith.constant 0 : i32
    %c0_i32_0 = arith.constant 0 : i32
    %c0_i32_1 = arith.constant 0 : i32
    return %c0_i32, %c0_i32_0 : i32, i32
  }
  func.func @transform_2(%arg0: i32) -> (i32, i32) {
    %c0_i32 = arith.constant 0 : i32
    %c0_i32_0 = arith.constant 0 : i32
    return %arg0, %c0_i32 : i32, i32
  }
}

</mosaic_0001>

<llo_original>
// kernel: tpu_custom_call.1
$region0: #{tpu_custom_call.1}
  #allocation0 [shape = 'u32[]', space=smem, size = 0x4, offset = 0x4, fixed_abs, tag = 'smem constant byte address 0x4 - core index']
  #allocation1 [shape = 'u32[144,128]{1,0:T(1,128)}', space=vmem, size = 0x12000, scoped, tag = 'internal scratch']
  %s0 = inlined_call_operand.vmem [shape: s32[16,1], index: 0, kind: input, shape index: {}]
  %s1 = inlined_call_operand.vmem [shape: f32[16,128], index: 1, kind: input, shape index: {}]
  %s2 = inlined_call_operand.hbm [shape: f32[16,128], index: 2, kind: output, shape index: {}]
  %s3 = sld [smem:[#allocation0]]
  $region18: #{tpu_custom_call.1} parent=0
    _
  %s5 = ssub.s32 1, %s3
  %s6 = scalar_select 0, %s5, %s3
  $region1: #{tpu_custom_call.1} parent=0
    #allocation2 [shape = 'u8[8192]{0}', space=vmem, size = 0x2000, scoped, tag = 'output window, operand 0, single buffered']
    #allocation3 [shape = 's32[1]{0}', space=sflag, size = 0x4, scoped, tag = 'scoped memory for tpu_custom_call.1']
    %7 = vsyncpa [#allocation3], 0
    // Predicated region
    $region2: #{tpu_custom_call.1} parent=1 // pred_check
      _
    $region3: #{tpu_custom_call.1} parent=1 // pred_check_branch
      %9 = sbr.rel (0) target = $region5
    $region4: #{tpu_custom_call.1} parent=1 // pred_region
      _
    $region5: #{tpu_custom_call.1} parent=1 // pred_fallthru
      _
    // Predicated region
    $region6: #{tpu_custom_call.1} parent=1 // pred_check
      _
    $region7: #{tpu_custom_call.1} parent=1 // pred_check_branch
      %11 = sbr.rel (0) target = $region9
    $region8: #{tpu_custom_call.1} parent=1 // pred_region
      _
    $region9: #{tpu_custom_call.1} parent=1 // pred_fallthru
      _
    %v12 = vld [vmem:[%s0] sm:$0xff]
    %v13 = vld [vmem:[%s0 + $0x8] sm:$0xff]
    %v14 = vlaneseq
    %v15 = vand.u32 %v14, 127
    %16 = vset.pattern.permute.xlu0 0
    %17 = vperm.xlu0 %16, %v12
    %v18 = vpop.permute.xlu0 %17
    %19 = vset.pattern.permute.xlu0 0
    %20 = vperm.xlu0 %19, %v13
    %v21 = vpop.permute.xlu0 %20
    %vm22 = vcmp.eq.s32.totalorder %v18, %v15
    %vm23 = vcmp.eq.s32.totalorder %v21, %v15
    %v24 = vsel %vm22, 1, 0
    %v25 = vsel %vm23, 1, 0
    %v26 = vcvt.s32.f32 %v24
    %v27 = vcvt.s32.f32 %v25
    %v28 = vld [vmem:[%s1] sm:$0xff]
    %v29 = vld [vmem:[%s1 + $0x8] sm:$0xff]
    %vm30 = vcmask 130048
    %v32 = vsel %vm30, %v26, 0
    %v35 = vsel %vm30, %v27, 0
    %37 = vmatprep.subr.mxu0 0.0
    %38 = vmatpush1.msra.mxu0 0.0
    %39 = vmatprep.subr.mxu0 0.0
    %40 = vmatpush1.msra.mxu0 0.0
    %41 = vmatprep.subr.mxu0 0.0
    %42 = vmatpush1.msra.mxu0 0.0
    %43 = vmatprep.subr.mxu0 0.0
    %44 = vmatpush1.msra.mxu0 0.0
    %45 = vmatprep.subr.mxu0 0.0
    %46 = vmatpush1.msra.mxu0 0.0
    %47 = vmatprep.subr.mxu0 0.0
    %48 = vmatpush1.msra.mxu0 0.0
    %49 = vmatprep.subr.mxu0 0.0
    %50 = vmatpush1.msra.mxu0 0.0
    %51 = vmatprep.subr.mxu0 0.0
    %52 = vmatpush1.msra.mxu0 0.0
    %53 = vmatprep.subr.mxu0 0.0
    %54 = vmatpush1.msra.mxu0 0.0
    %55 = vmatprep.subr.mxu0 0.0
    %56 = vmatpush1.msra.mxu0 0.0
    %57 = vmatprep.subr.mxu0 0.0
    %58 = vmatpush1.msra.mxu0 0.0
    %59 = vmatprep.subr.mxu0 0.0
    %60 = vmatpush1.msra.mxu0 0.0
    %61 = vmatprep.subr.mxu0 0.0
    %62 = vmatpush1.msra.mxu0 0.0
    %63 = vmatprep.subr.mxu0 0.0
    %64 = vmatpush1.msra.mxu0 0.0
    %65 = vmatprep.subr.mxu0 0.0
    %66 = vmatpush1.msra.mxu0 %v29
    %67 = vmatprep.subr.mxu0 0.0
    %68 = vmatpush1.msra.mxu0 %v28
    %69 = vmatprep.subr.mxu0 0.0
    %70 = vmatpush2.msra.mxu0 0.0
    %71 = vmatprep.subr.mxu0 0.0
    %72 = vmatpush2.msra.mxu0 0.0
    %73 = vmatprep.subr.mxu0 0.0
    %74 = vmatpush2.msra.mxu0 0.0
    %75 = vmatprep.subr.mxu0 0.0
    %76 = vmatpush2.msra.mxu0 0.0
    %77 = vmatprep.subr.mxu0 0.0
    %78 = vmatpush2.msra.mxu0 0.0
    %79 = vmatprep.subr.mxu0 0.0
    %80 = vmatpush2.msra.mxu0 0.0
    %81 = vmatprep.subr.mxu0 0.0
    %82 = vmatpush2.msra.mxu0 0.0
    %83 = vmatprep.subr.mxu0 0.0
    %84 = vmatpush2.msra.mxu0 0.0
    %85 = vmatprep.subr.mxu0 0.0
    %86 = vmatpush2.msra.mxu0 0.0
    %87 = vmatprep.subr.mxu0 0.0
    %88 = vmatpush2.msra.mxu0 0.0
    %89 = vmatprep.subr.mxu0 0.0
    %90 = vmatpush2.msra.mxu0 0.0
    %91 = vmatprep.subr.mxu0 0.0
    %92 = vmatpush2.msra.mxu0 0.0
    %93 = vmatprep.subr.mxu0 0.0
    %94 = vmatpush2.msra.mxu0 0.0
    %95 = vmatprep.subr.mxu0 0.0
    %96 = vmatpush2.msra.mxu0 0.0
    %97 = vmatprep.subr.mxu0 0.0
    %98 = vmatpush2.msra.mxu0 0.0
    %99 = vmatprep.subr.mxu0 0.0
    %100 = vmatpush2.msra.mxu0 0.0
    %101 = vmatprep.mubr.f32.mxu0 0.0
    %102 = vmatmul.mubr.f32.gmra.mxu0 %v32
    %v103 = vpop.f32.mrf.mxu0
    %v104 = vadd.f32 0.0, %v103
    %v105 = vpop.f32.mrf.mxu0
    %106 = vmatprep.mubr.f32.mxu0 0.0
    %107 = vmatmul.mubr.f32.gmra.mxu0 %v35
    %v108 = vpop.f32.mrf.mxu0
    %v109 = vadd.f32 0.0, %v108
    %v110 = vpop.f32.mrf.mxu0
    %111 = vdwg.mxu0
    %v112 = vmul.f32 %v104, 11.313708
    %v113 = vmul.f32 %v109, 11.313708
    %114 = vst [vmem:[#allocation2] sm:$0xff] %v112
    %115 = vst [vmem:[#allocation2 + $0x8] sm:$0xff] %v113
    // Predicated region
    $region10: #{tpu_custom_call.1} parent=1 // pred_check
      _
    $region11: #{tpu_custom_call.1} parent=1 // pred_check_branch
      %117 = sbr.rel (0) target = $region13
    $region12: #{tpu_custom_call.1} parent=1 // pred_region
      %s119 = ssub.s32 256, 256
      %120 = vsyncadd [#allocation3], %s119
      %s121 = sshll.u32 [#allocation2], 4
      %s122 = int_to_ptr.vmem [resolvable:$true] %s121
      %127 = dma.vmem_to_hbm [thread:$0]  %s122, 256, %s2, [#allocation3], 128, 128, 8
    $region13: #{tpu_custom_call.1} parent=1 // pred_fallthru
      _
    // Predicated region
    $region14: #{tpu_custom_call.1} parent=1 // pred_check
      _
    $region15: #{tpu_custom_call.1} parent=1 // pred_check_branch
      %129 = sbr.rel (0) target = $region17
    $region16: #{tpu_custom_call.1} parent=1 // pred_region
      %130 = dma.done [#allocation3], 256
    $region17: #{tpu_custom_call.1} parent=1 // pred_fallthru
      _
    %131 = vsyncpa [#allocation3], 1

</llo_original>
